<compile_context>
chip_gen: v7x
topology: tpu7x:2x2x1
jax: 0.10.0
libtpu: 0.0.40
codegen_flags: <defaults>
</compile_context>

<pallas_src>
import jax
import jax.numpy as jnp
from jax.experimental import pallas as pl
from jax.experimental.pallas import tpu as pltpu

KH = KW = 3     # kernel_size
CP = 8          # channel rows padded to one sublane tile (Cin=4 -> 8, Cmid=8)
LANE = 128
L_CAP = 32 * 1024   # lanes per block: ~<24 MiB live set, safe inside v7x's 64 MiB VMEM


def _build_kernel(Wp, Cin):
    # static lane shifts for the 9 taps (row-major over (dy, dx)); center tap index = 4
    shifts = [(dy - 1) * Wp + (dx - 1) for dy in range(KH) for dx in range(KW)]
    center = (KH * KW) // 2

    def kernel(mask_ref, x_ref, w1_ref, b1_ref, w2_ref, b2_ref, o_ref, col_ref):
        L = o_ref.shape[-1]                               # IPB * Hp * Wp (lane axis)

        # ---- MaxPool2d(2): elementwise max of the 4 pre-gathered candidates ----
        x = x_ref[...]                                    # (4, Cin, L)
        p = jnp.maximum(jnp.maximum(x[0], x[1]),
                        jnp.maximum(x[2], x[3]))          # (Cin, L)
        if Cin < CP:
            # pad channels to a full sublane tile; zero rows meet zero weight columns
            p = jnp.concatenate(
                [p, jnp.zeros((CP - Cin, L), p.dtype)], axis=0)    # (CP, L)

        def fill_im2col(a):
            # col_ref rows [j*CP, (j+1)*CP) = tap j of `a` (SAME zero padding).
            # pltpu.roll is a single XLU lane rotation; the precomputed masks zero every
            # lane that would otherwise read wrapped or cross-image data.
            for j, s in enumerate(shifts):
                if j == center:
                    t = a
                else:
                    t = pltpu.roll(a, shift=(-s) % L, axis=1) * mask_ref[j]
                col_ref[pl.ds(j * CP, CP), :] = t

        # ---- Conv1 (3x3, zero pad 1) + ReLU: one MXU matmul, K = 9*CP ----
        fill_im2col(p)
        h1 = jnp.dot(w1_ref[...], col_ref[...],
                     preferred_element_type=jnp.float32)  # (Cmid, L)
        h1 = jnp.maximum(h1 + b1_ref[...], 0.0)

        # ---- Conv2 (3x3, zero pad 1) + ReLU: one MXU matmul, K = 9*Cmid ----
        fill_im2col(h1)
        h2 = jnp.dot(w2_ref[...], col_ref[...],
                     preferred_element_type=jnp.float32)  # (Cout, L)
        h2 = jnp.maximum(h2 + b2_ref[...], 0.0)

        o_ref[...] = h2.astype(o_ref.dtype)

    return kernel


def _choose_nb(N, Mi):
    """Batch blocks: prefer per-block L <= cap, then L a multiple of 128, then widest L."""
    best = None
    for nb in range(1, N + 1):
        if N % nb:
            continue
        L = (N // nb) * Mi
        score = (L <= L_CAP, L % LANE == 0, -nb)
        if best is None or score > best[0]:
            best = (score, nb)
    return best[1]


def conv_block_forward(x_nchw, w1, b1, w2, b2):
    """x_nchw: (N, Cin, H, W) f32; w: (3, 3, Cin, Cout) HWIO; b: (Cout,)."""
    N, Cin, H, W = x_nchw.shape
    assert H % 2 == 0 and W % 2 == 0, "MaxPool2d(2) path assumes even H, W"
    Hp, Wp = H // 2, W // 2
    Mi = Hp * Wp
    Cmid = w1.shape[-1]
    Cout = w2.shape[-1]
    assert Cin <= CP and Cmid == CP, "kernel packs channels into 8-row sublane tiles"

    NB = _choose_nb(N, Mi)
    IPB = N // NB
    L = IPB * Mi

    # --- input repack: 4 maxpool candidates x Cin channel rows (NO zero-pad in HBM) x
    #     flattened pooled spatial, images of a block stacked on the lane axis ---
    xr = x_nchw.reshape(N, Cin, Hp, 2, Wp, 2)
    cand = jnp.transpose(xr, (0, 3, 5, 1, 2, 4)).reshape(N, 4, Cin, Mi)
    cand = cand.reshape(NB, IPB, 4, Cin, Mi)
    cand = jnp.transpose(cand, (0, 2, 3, 1, 4)).reshape(NB, 4, Cin, L)

    # --- boundary masks hoisted out of the kernel (shared by both convs, all blocks) ---
    lane = jnp.arange(L, dtype=jnp.int32)
    mm = lane % Mi                                        # per-image flat pixel index
    yy = mm // Wp
    xx = mm % Wp
    mlist = []
    for dy in range(KH):
        for dx in range(KW):
            m = jnp.ones((L,), jnp.bool_)
            if dy == 0:
                m = m & (yy >= 1)
            if dy == KH - 1:
                m = m & (yy < Hp - 1)
            if dx == 0:
                m = m & (xx >= 1)
            if dx == KW - 1:
                m = m & (xx < Wp - 1)
            mlist.append(m)
    masks = jnp.stack(mlist).astype(jnp.float32).reshape(KH * KW, 1, L)

    # --- weights packed 2-D for a single im2col matmul per conv (conv1 channel rows
    #     zero-padded to CP so both convs share the K = 9*CP layout) ---
    w1p = jnp.pad(w1, ((0, 0), (0, 0), (0, CP - Cin), (0, 0)))        # (3,3,CP,Cmid)
    w1t = jnp.transpose(w1p, (3, 0, 1, 2)).reshape(Cmid, KH * KW * CP)
    w2t = jnp.transpose(w2, (3, 0, 1, 2)).reshape(Cout, KH * KW * CP)
    b1c = b1.reshape(Cmid, 1).astype(jnp.float32)
    b2c = b2.reshape(Cout, 1).astype(jnp.float32)

    out = pl.pallas_call(
        _build_kernel(Wp, Cin),
        out_shape=jax.ShapeDtypeStruct((NB, Cout, L), jnp.float32),
        grid_spec=pltpu.PrefetchScalarGridSpec(
            num_scalar_prefetch=0,
            grid=(NB,),
            in_specs=[
                pl.BlockSpec((KH * KW, 1, L), lambda b: (0, 0, 0)),       # masks (const)
                pl.BlockSpec((None, 4, Cin, L), lambda b: (b, 0, 0, 0)),  # pool candidates
                pl.BlockSpec((Cmid, KH * KW * CP), lambda b: (0, 0)),     # w1 packed
                pl.BlockSpec((Cmid, 1), lambda b: (0, 0)),                # b1
                pl.BlockSpec((Cout, KH * KW * CP), lambda b: (0, 0)),     # w2 packed
                pl.BlockSpec((Cout, 1), lambda b: (0, 0)),                # b2
            ],
            out_specs=pl.BlockSpec((None, Cout, L), lambda b: (b, 0, 0)),
            scratch_shapes=[pltpu.VMEM((KH * KW * CP, L), jnp.float32)],  # shared im2col
        ),
        compiler_params=pltpu.CompilerParams(
            dimension_semantics=("parallel",),
            vmem_limit_bytes=48 * 1024 * 1024,
        ),
    )(masks, cand, w1t, b1c, w2t, b2c)

    # --- cheap un-pack back to NCHW ---
    out = out.reshape(NB, Cout, IPB, Hp, Wp)
    out = jnp.transpose(out, (0, 2, 1, 3, 4)).reshape(N, Cout, Hp, Wp)
    return out


def reference_forward(x_nchw, w1, b1, w2, b2):
    """Plain-JAX reference of the same forward (for correctness checking)."""
    y = jax.lax.reduce_window(x_nchw, -jnp.inf, jax.lax.max,
                              (1, 1, 2, 2), (1, 1, 2, 2), 'VALID')
    dn1 = jax.lax.conv_dimension_numbers(y.shape, w1.shape,
                                         ('NCHW', 'HWIO', 'NCHW'))
    y = jax.lax.conv_general_dilated(y, w1, (1, 1), 'SAME',
                                     dimension_numbers=dn1)
    y = jax.nn.relu(y + b1[None, :, None, None])
    dn2 = jax.lax.conv_dimension_numbers(y.shape, w2.shape,
                                         ('NCHW', 'HWIO', 'NCHW'))
    y = jax.lax.conv_general_dilated(y, w2, (1, 1), 'SAME',
                                     dimension_numbers=dn2)
    y = jax.nn.relu(y + b2[None, :, None, None])
    return y


if __name__ == "__main__":
    key = jax.random.PRNGKey(0)
    kx, kw1, kb1, kw2, kb2 = jax.random.split(key, 5)

    N, Cin, H, W = 2, 4, 16, 16
    Cmid, Cout = 8, 8

    x = jax.random.normal(kx, (N, Cin, H, W), dtype=jnp.float32)
    # Deterministic "Conv2d" parameters (HWIO layout), scaled like a fan-in init.
    w1 = jax.random.normal(kw1, (KH, KW, Cin, Cmid), dtype=jnp.float32) * 0.2
    b1 = jax.random.normal(kb1, (Cmid,), dtype=jnp.float32) * 0.1
    w2 = jax.random.normal(kw2, (KH, KW, Cmid, Cout), dtype=jnp.float32) * 0.2
    b2 = jax.random.normal(kb2, (Cout,), dtype=jnp.float32) * 0.1

    fwd = jax.jit(conv_block_forward)
    out = jax.block_until_ready(fwd(x, w1, b1, w2, b2))

    ref = jax.block_until_ready(reference_forward(x, w1, b1, w2, b2))
    assert out.shape == (N, Cout, H // 2, W // 2), out.shape
    assert jnp.allclose(out, ref, atol=1e-4, rtol=1e-4), \
        float(jnp.max(jnp.abs(out - ref)))

    print("KERNEL_OK")
</pallas_src>

<mosaic_0001>
module attributes {stable_mosaic.version = 11 : i64} {
  func.func @kernel(%arg0: i32, %arg1: memref<9x1x128xf32, #tpu.memory_space<vmem>>, %arg2: memref<1x4x4x128xf32, #tpu.memory_space<vmem>>, %arg3: memref<8x72xf32, #tpu.memory_space<vmem>>, %arg4: memref<8x1xf32, #tpu.memory_space<vmem>>, %arg5: memref<8x72xf32, #tpu.memory_space<vmem>>, %arg6: memref<8x1xf32, #tpu.memory_space<vmem>>, %arg7: memref<1x8x128xf32, #tpu.memory_space<vmem>>, %arg8: memref<72x128xf32, #tpu.memory_space<vmem>>) attributes {dimension_semantics = [#tpu.dimension_semantics<parallel>], iteration_bounds = array<i64: 1>, scalar_prefetch = 0 : i64, scratch_operands = 1 : i64, tpu.core_type = #tpu.core_type<tc>, window_params = [{pipeline_mode = #tpu.pipeline_mode<synchronous>, transform_indices = @transform_0, window_bounds = array<i64: 9, 1, 128>}, {transform_indices = @transform_1, window_bounds = array<i64: 1, 4, 4, 128>}, {pipeline_mode = #tpu.pipeline_mode<synchronous>, transform_indices = @transform_2, window_bounds = array<i64: 8, 72>}, {pipeline_mode = #tpu.pipeline_mode<synchronous>, transform_indices = @transform_3, window_bounds = array<i64: 8, 1>}, {pipeline_mode = #tpu.pipeline_mode<synchronous>, transform_indices = @transform_4, window_bounds = array<i64: 8, 72>}, {pipeline_mode = #tpu.pipeline_mode<synchronous>, transform_indices = @transform_5, window_bounds = array<i64: 8, 1>}, {transform_indices = @transform_6, window_bounds = array<i64: 1, 8, 128>}]} {
    %c0 = arith.constant 0 : index
    %c0_0 = arith.constant 0 : index
    %c0_1 = arith.constant 0 : index
    %c0_2 = arith.constant 0 : index
    %0 = vector.load %arg2[%c0, %c0_0, %c0_1, %c0_2] : memref<1x4x4x128xf32, #tpu.memory_space<vmem>>, vector<1x4x4x128xf32>
    %1 = vector.shape_cast %0 : vector<1x4x4x128xf32> to vector<4x4x128xf32>
    %2 = vector.extract_strided_slice %1 {offsets = [0, 0, 0], sizes = [1, 4, 128], strides = [1, 1, 1]} : vector<4x4x128xf32> to vector<1x4x128xf32>
    %3 = vector.shape_cast %2 : vector<1x4x128xf32> to vector<4x128xf32>
    %4 = vector.extract_strided_slice %1 {offsets = [1, 0, 0], sizes = [1, 4, 128], strides = [1, 1, 1]} : vector<4x4x128xf32> to vector<1x4x128xf32>
    %5 = vector.shape_cast %4 : vector<1x4x128xf32> to vector<4x128xf32>
    %6 = arith.maximumf %3, %5 : vector<4x128xf32>
    %7 = vector.extract_strided_slice %1 {offsets = [2, 0, 0], sizes = [1, 4, 128], strides = [1, 1, 1]} : vector<4x4x128xf32> to vector<1x4x128xf32>
    %8 = vector.shape_cast %7 : vector<1x4x128xf32> to vector<4x128xf32>
    %9 = vector.extract_strided_slice %1 {offsets = [3, 0, 0], sizes = [1, 4, 128], strides = [1, 1, 1]} : vector<4x4x128xf32> to vector<1x4x128xf32>
    %10 = vector.shape_cast %9 : vector<1x4x128xf32> to vector<4x128xf32>
    %11 = arith.maximumf %8, %10 : vector<4x128xf32>
    %12 = arith.maximumf %6, %11 : vector<4x128xf32>
    %cst = arith.constant 0.000000e+00 : f32
    %13 = vector.broadcast %cst : f32 to vector<4x128xf32>
    %14 = tpu.concatenate %12, %13 in 0 : vector<4x128xf32>, vector<4x128xf32> -> vector<8x128xf32>
    %c9_i32 = arith.constant 9 : i32
    %15 = tpu.dynamic_rotate %14 by %c9_i32 dim 1 : vector<8x128xf32>, i32 -> vector<8x128xf32>
    %c0_3 = arith.constant 0 : index
    %c0_4 = arith.constant 0 : index
    %c0_5 = arith.constant 0 : index
    %16 = vector.load %arg1[%c0_3, %c0_4, %c0_5] : memref<9x1x128xf32, #tpu.memory_space<vmem>>, vector<1x1x128xf32>
    %17 = vector.shape_cast %16 : vector<1x1x128xf32> to vector<1x128xf32>
    %18 = vector.broadcast %17 : vector<1x128xf32> to vector<8x128xf32>
    %19 = arith.mulf %15, %18 : vector<8x128xf32>
    %c0_6 = arith.constant 0 : index
    %c0_7 = arith.constant 0 : index
    %20 = vector.load %arg8[%c0_6, %c0_7] : memref<72x128xf32, #tpu.memory_space<vmem>>, vector<8x128xf32>
    tpu.vector_store %arg8[%c0_6, %c0_7], %19 {strides = array<i32>} : memref<72x128xf32, #tpu.memory_space<vmem>>, vector<8x128xf32>,
    %c8_i32 = arith.constant 8 : i32
    %21 = tpu.dynamic_rotate %14 by %c8_i32 dim 1 : vector<8x128xf32>, i32 -> vector<8x128xf32>
    %c1 = arith.constant 1 : index
    %c0_8 = arith.constant 0 : index
    %c0_9 = arith.constant 0 : index
    %22 = vector.load %arg1[%c1, %c0_8, %c0_9] : memref<9x1x128xf32, #tpu.memory_space<vmem>>, vector<1x1x128xf32>
    %23 = vector.shape_cast %22 : vector<1x1x128xf32> to vector<1x128xf32>
    %24 = vector.broadcast %23 : vector<1x128xf32> to vector<8x128xf32>
    %25 = arith.mulf %21, %24 : vector<8x128xf32>
    %c8 = arith.constant 8 : index
    %c0_10 = arith.constant 0 : index
    %26 = vector.load %arg8[%c8, %c0_10] : memref<72x128xf32, #tpu.memory_space<vmem>>, vector<8x128xf32>
    tpu.vector_store %arg8[%c8, %c0_10], %25 {strides = array<i32>} : memref<72x128xf32, #tpu.memory_space<vmem>>, vector<8x128xf32>,
    %c7_i32 = arith.constant 7 : i32
    %27 = tpu.dynamic_rotate %14 by %c7_i32 dim 1 : vector<8x128xf32>, i32 -> vector<8x128xf32>
    %c2 = arith.constant 2 : index
    %c0_11 = arith.constant 0 : index
    %c0_12 = arith.constant 0 : index
    %28 = vector.load %arg1[%c2, %c0_11, %c0_12] : memref<9x1x128xf32, #tpu.memory_space<vmem>>, vector<1x1x128xf32>
    %29 = vector.shape_cast %28 : vector<1x1x128xf32> to vector<1x128xf32>
    %30 = vector.broadcast %29 : vector<1x128xf32> to vector<8x128xf32>
    %31 = arith.mulf %27, %30 : vector<8x128xf32>
    %c16 = arith.constant 16 : index
    %c0_13 = arith.constant 0 : index
    %32 = vector.load %arg8[%c16, %c0_13] : memref<72x128xf32, #tpu.memory_space<vmem>>, vector<8x128xf32>
    tpu.vector_store %arg8[%c16, %c0_13], %31 {strides = array<i32>} : memref<72x128xf32, #tpu.memory_space<vmem>>, vector<8x128xf32>,
    %c1_i32 = arith.constant 1 : i32
    %33 = tpu.dynamic_rotate %14 by %c1_i32 dim 1 : vector<8x128xf32>, i32 -> vector<8x128xf32>
    %c3 = arith.constant 3 : index
    %c0_14 = arith.constant 0 : index
    %c0_15 = arith.constant 0 : index
    %34 = vector.load %arg1[%c3, %c0_14, %c0_15] : memref<9x1x128xf32, #tpu.memory_space<vmem>>, vector<1x1x128xf32>
    %35 = vector.shape_cast %34 : vector<1x1x128xf32> to vector<1x128xf32>
    %36 = vector.broadcast %35 : vector<1x128xf32> to vector<8x128xf32>
    %37 = arith.mulf %33, %36 : vector<8x128xf32>
    %c24 = arith.constant 24 : index
    %c0_16 = arith.constant 0 : index
    %38 = vector.load %arg8[%c24, %c0_16] : memref<72x128xf32, #tpu.memory_space<vmem>>, vector<8x128xf32>
    tpu.vector_store %arg8[%c24, %c0_16], %37 {strides = array<i32>} : memref<72x128xf32, #tpu.memory_space<vmem>>, vector<8x128xf32>,
    %c32 = arith.constant 32 : index
    %c0_17 = arith.constant 0 : index
    %39 = vector.load %arg8[%c32, %c0_17] : memref<72x128xf32, #tpu.memory_space<vmem>>, vector<8x128xf32>
    tpu.vector_store %arg8[%c32, %c0_17], %14 {strides = array<i32>} : memref<72x128xf32, #tpu.memory_space<vmem>>, vector<8x128xf32>,
    %c127_i32 = arith.constant 127 : i32
    %40 = tpu.dynamic_rotate %14 by %c127_i32 dim 1 : vector<8x128xf32>, i32 -> vector<8x128xf32>
    %c5 = arith.constant 5 : index
    %c0_18 = arith.constant 0 : index
    %c0_19 = arith.constant 0 : index
    %41 = vector.load %arg1[%c5, %c0_18, %c0_19] : memref<9x1x128xf32, #tpu.memory_space<vmem>>, vector<1x1x128xf32>
    %42 = vector.shape_cast %41 : vector<1x1x128xf32> to vector<1x128xf32>
    %43 = vector.broadcast %42 : vector<1x128xf32> to vector<8x128xf32>
    %44 = arith.mulf %40, %43 : vector<8x128xf32>
    %c40 = arith.constant 40 : index
    %c0_20 = arith.constant 0 : index
    %45 = vector.load %arg8[%c40, %c0_20] : memref<72x128xf32, #tpu.memory_space<vmem>>, vector<8x128xf32>
    tpu.vector_store %arg8[%c40, %c0_20], %44 {strides = array<i32>} : memref<72x128xf32, #tpu.memory_space<vmem>>, vector<8x128xf32>,
    %c121_i32 = arith.constant 121 : i32
    %46 = tpu.dynamic_rotate %14 by %c121_i32 dim 1 : vector<8x128xf32>, i32 -> vector<8x128xf32>
    %c6 = arith.constant 6 : index
    %c0_21 = arith.constant 0 : index
    %c0_22 = arith.constant 0 : index
    %47 = vector.load %arg1[%c6, %c0_21, %c0_22] : memref<9x1x128xf32, #tpu.memory_space<vmem>>, vector<1x1x128xf32>
    %48 = vector.shape_cast %47 : vector<1x1x128xf32> to vector<1x128xf32>
    %49 = vector.broadcast %48 : vector<1x128xf32> to vector<8x128xf32>
    %50 = arith.mulf %46, %49 : vector<8x128xf32>
    %c48 = arith.constant 48 : index
    %c0_23 = arith.constant 0 : index
    %51 = vector.load %arg8[%c48, %c0_23] : memref<72x128xf32, #tpu.memory_space<vmem>>, vector<8x128xf32>
    tpu.vector_store %arg8[%c48, %c0_23], %50 {strides = array<i32>} : memref<72x128xf32, #tpu.memory_space<vmem>>, vector<8x128xf32>,
    %c120_i32 = arith.constant 120 : i32
    %52 = tpu.dynamic_rotate %14 by %c120_i32 dim 1 : vector<8x128xf32>, i32 -> vector<8x128xf32>
    %c7 = arith.constant 7 : index
    %c0_24 = arith.constant 0 : index
    %c0_25 = arith.constant 0 : index
    %53 = vector.load %arg1[%c7, %c0_24, %c0_25] : memref<9x1x128xf32, #tpu.memory_space<vmem>>, vector<1x1x128xf32>
    %54 = vector.shape_cast %53 : vector<1x1x128xf32> to vector<1x128xf32>
    %55 = vector.broadcast %54 : vector<1x128xf32> to vector<8x128xf32>
    %56 = arith.mulf %52, %55 : vector<8x128xf32>
    %c56 = arith.constant 56 : index
    %c0_26 = arith.constant 0 : index
    %57 = vector.load %arg8[%c56, %c0_26] : memref<72x128xf32, #tpu.memory_space<vmem>>, vector<8x128xf32>
    tpu.vector_store %arg8[%c56, %c0_26], %56 {strides = array<i32>} : memref<72x128xf32, #tpu.memory_space<vmem>>, vector<8x128xf32>,
    %c119_i32 = arith.constant 119 : i32
    %58 = tpu.dynamic_rotate %14 by %c119_i32 dim 1 : vector<8x128xf32>, i32 -> vector<8x128xf32>
    %c8_27 = arith.constant 8 : index
    %c0_28 = arith.constant 0 : index
    %c0_29 = arith.constant 0 : index
    %59 = vector.load %arg1[%c8_27, %c0_28, %c0_29] : memref<9x1x128xf32, #tpu.memory_space<vmem>>, vector<1x1x128xf32>
    %60 = vector.shape_cast %59 : vector<1x1x128xf32> to vector<1x128xf32>
    %61 = vector.broadcast %60 : vector<1x128xf32> to vector<8x128xf32>
    %62 = arith.mulf %58, %61 : vector<8x128xf32>
    %c64 = arith.constant 64 : index
    %c0_30 = arith.constant 0 : index
    %63 = vector.load %arg8[%c64, %c0_30] : memref<72x128xf32, #tpu.memory_space<vmem>>, vector<8x128xf32>
    tpu.vector_store %arg8[%c64, %c0_30], %62 {strides = array<i32>} : memref<72x128xf32, #tpu.memory_space<vmem>>, vector<8x128xf32>,
    %c0_31 = arith.constant 0 : index
    %c0_32 = arith.constant 0 : index
    %64 = vector.load %arg3[%c0_31, %c0_32] : memref<8x72xf32, #tpu.memory_space<vmem>>, vector<8x72xf32>
    %c0_33 = arith.constant 0 : index
    %c0_34 = arith.constant 0 : index
    %65 = vector.load %arg8[%c0_33, %c0_34] : memref<72x128xf32, #tpu.memory_space<vmem>>, vector<72x128xf32>
    %cst_35 = arith.constant dense<0.000000e+00> : vector<8x128xf32>
    %66 = tpu.matmul %64, %65, %cst_35 {dimension_numbers = #tpu.dot_dimension_numbers<[1], [0], [0], [1], [0, 0, 1, 1], [], []>} : vector<8x72xf32>, vector<72x128xf32>, vector<8x128xf32> -> vector<8x128xf32>
    %c0_36 = arith.constant 0 : index
    %c0_37 = arith.constant 0 : index
    %67 = vector.load %arg4[%c0_36, %c0_37] : memref<8x1xf32, #tpu.memory_space<vmem>>, vector<8x1xf32>
    %68 = vector.broadcast %67 : vector<8x1xf32> to vector<8x128xf32>
    %69 = arith.addf %66, %68 : vector<8x128xf32>
    %cst_38 = arith.constant 0.000000e+00 : f32
    %70 = vector.broadcast %cst_38 : f32 to vector<8x128xf32>
    %71 = arith.maximumf %69, %70 : vector<8x128xf32>
    %c9_i32_39 = arith.constant 9 : i32
    %72 = tpu.dynamic_rotate %71 by %c9_i32_39 dim 1 : vector<8x128xf32>, i32 -> vector<8x128xf32>
    %c0_40 = arith.constant 0 : index
    %c0_41 = arith.constant 0 : index
    %c0_42 = arith.constant 0 : index
    %73 = vector.load %arg1[%c0_40, %c0_41, %c0_42] : memref<9x1x128xf32, #tpu.memory_space<vmem>>, vector<1x1x128xf32>
    %74 = vector.shape_cast %73 : vector<1x1x128xf32> to vector<1x128xf32>
    %75 = vector.broadcast %74 : vector<1x128xf32> to vector<8x128xf32>
    %76 = arith.mulf %72, %75 : vector<8x128xf32>
    %c0_43 = arith.constant 0 : index
    %c0_44 = arith.constant 0 : index
    %77 = vector.load %arg8[%c0_43, %c0_44] : memref<72x128xf32, #tpu.memory_space<vmem>>, vector<8x128xf32>
    tpu.vector_store %arg8[%c0_43, %c0_44], %76 {strides = array<i32>} : memref<72x128xf32, #tpu.memory_space<vmem>>, vector<8x128xf32>,
    %c8_i32_45 = arith.constant 8 : i32
    %78 = tpu.dynamic_rotate %71 by %c8_i32_45 dim 1 : vector<8x128xf32>, i32 -> vector<8x128xf32>
    %c1_46 = arith.constant 1 : index
    %c0_47 = arith.constant 0 : index
    %c0_48 = arith.constant 0 : index
    %79 = vector.load %arg1[%c1_46, %c0_47, %c0_48] : memref<9x1x128xf32, #tpu.memory_space<vmem>>, vector<1x1x128xf32>
    %80 = vector.shape_cast %79 : vector<1x1x128xf32> to vector<1x128xf32>
    %81 = vector.broadcast %80 : vector<1x128xf32> to vector<8x128xf32>
    %82 = arith.mulf %78, %81 : vector<8x128xf32>
    %c8_49 = arith.constant 8 : index
    %c0_50 = arith.constant 0 : index
    %83 = vector.load %arg8[%c8_49, %c0_50] : memref<72x128xf32, #tpu.memory_space<vmem>>, vector<8x128xf32>
    tpu.vector_store %arg8[%c8_49, %c0_50], %82 {strides = array<i32>} : memref<72x128xf32, #tpu.memory_space<vmem>>, vector<8x128xf32>,
    %c7_i32_51 = arith.constant 7 : i32
    %84 = tpu.dynamic_rotate %71 by %c7_i32_51 dim 1 : vector<8x128xf32>, i32 -> vector<8x128xf32>
    %c2_52 = arith.constant 2 : index
    %c0_53 = arith.constant 0 : index
    %c0_54 = arith.constant 0 : index
    %85 = vector.load %arg1[%c2_52, %c0_53, %c0_54] : memref<9x1x128xf32, #tpu.memory_space<vmem>>, vector<1x1x128xf32>
    %86 = vector.shape_cast %85 : vector<1x1x128xf32> to vector<1x128xf32>
    %87 = vector.broadcast %86 : vector<1x128xf32> to vector<8x128xf32>
    %88 = arith.mulf %84, %87 : vector<8x128xf32>
    %c16_55 = arith.constant 16 : index
    %c0_56 = arith.constant 0 : index
    %89 = vector.load %arg8[%c16_55, %c0_56] : memref<72x128xf32, #tpu.memory_space<vmem>>, vector<8x128xf32>
    tpu.vector_store %arg8[%c16_55, %c0_56], %88 {strides = array<i32>} : memref<72x128xf32, #tpu.memory_space<vmem>>, vector<8x128xf32>,
    %c1_i32_57 = arith.constant 1 : i32
    %90 = tpu.dynamic_rotate %71 by %c1_i32_57 dim 1 : vector<8x128xf32>, i32 -> vector<8x128xf32>
    %c3_58 = arith.constant 3 : index
    %c0_59 = arith.constant 0 : index
    %c0_60 = arith.constant 0 : index
    %91 = vector.load %arg1[%c3_58, %c0_59, %c0_60] : memref<9x1x128xf32, #tpu.memory_space<vmem>>, vector<1x1x128xf32>
    %92 = vector.shape_cast %91 : vector<1x1x128xf32> to vector<1x128xf32>
    %93 = vector.broadcast %92 : vector<1x128xf32> to vector<8x128xf32>
    %94 = arith.mulf %90, %93 : vector<8x128xf32>
    %c24_61 = arith.constant 24 : index
    %c0_62 = arith.constant 0 : index
    %95 = vector.load %arg8[%c24_61, %c0_62] : memref<72x128xf32, #tpu.memory_space<vmem>>, vector<8x128xf32>
    tpu.vector_store %arg8[%c24_61, %c0_62], %94 {strides = array<i32>} : memref<72x128xf32, #tpu.memory_space<vmem>>, vector<8x128xf32>,
    %c32_63 = arith.constant 32 : index
    %c0_64 = arith.constant 0 : index
    %96 = vector.load %arg8[%c32_63, %c0_64] : memref<72x128xf32, #tpu.memory_space<vmem>>, vector<8x128xf32>
    tpu.vector_store %arg8[%c32_63, %c0_64], %71 {strides = array<i32>} : memref<72x128xf32, #tpu.memory_space<vmem>>, vector<8x128xf32>,
    %c127_i32_65 = arith.constant 127 : i32
    %97 = tpu.dynamic_rotate %71 by %c127_i32_65 dim 1 : vector<8x128xf32>, i32 -> vector<8x128xf32>
    %c5_66 = arith.constant 5 : index
    %c0_67 = arith.constant 0 : index
    %c0_68 = arith.constant 0 : index
    %98 = vector.load %arg1[%c5_66, %c0_67, %c0_68] : memref<9x1x128xf32, #tpu.memory_space<vmem>>, vector<1x1x128xf32>
    %99 = vector.shape_cast %98 : vector<1x1x128xf32> to vector<1x128xf32>
    %100 = vector.broadcast %99 : vector<1x128xf32> to vector<8x128xf32>
    %101 = arith.mulf %97, %100 : vector<8x128xf32>
    %c40_69 = arith.constant 40 : index
    %c0_70 = arith.constant 0 : index
    %102 = vector.load %arg8[%c40_69, %c0_70] : memref<72x128xf32, #tpu.memory_space<vmem>>, vector<8x128xf32>
    tpu.vector_store %arg8[%c40_69, %c0_70], %101 {strides = array<i32>} : memref<72x128xf32, #tpu.memory_space<vmem>>, vector<8x128xf32>,
    %c121_i32_71 = arith.constant 121 : i32
    %103 = tpu.dynamic_rotate %71 by %c121_i32_71 dim 1 : vector<8x128xf32>, i32 -> vector<8x128xf32>
    %c6_72 = arith.constant 6 : index
    %c0_73 = arith.constant 0 : index
    %c0_74 = arith.constant 0 : index
    %104 = vector.load %arg1[%c6_72, %c0_73, %c0_74] : memref<9x1x128xf32, #tpu.memory_space<vmem>>, vector<1x1x128xf32>
    %105 = vector.shape_cast %104 : vector<1x1x128xf32> to vector<1x128xf32>
    %106 = vector.broadcast %105 : vector<1x128xf32> to vector<8x128xf32>
    %107 = arith.mulf %103, %106 : vector<8x128xf32>
    %c48_75 = arith.constant 48 : index
    %c0_76 = arith.constant 0 : index
    %108 = vector.load %arg8[%c48_75, %c0_76] : memref<72x128xf32, #tpu.memory_space<vmem>>, vector<8x128xf32>
    tpu.vector_store %arg8[%c48_75, %c0_76], %107 {strides = array<i32>} : memref<72x128xf32, #tpu.memory_space<vmem>>, vector<8x128xf32>,
    %c120_i32_77 = arith.constant 120 : i32
    %109 = tpu.dynamic_rotate %71 by %c120_i32_77 dim 1 : vector<8x128xf32>, i32 -> vector<8x128xf32>
    %c7_78 = arith.constant 7 : index
    %c0_79 = arith.constant 0 : index
    %c0_80 = arith.constant 0 : index
    %110 = vector.load %arg1[%c7_78, %c0_79, %c0_80] : memref<9x1x128xf32, #tpu.memory_space<vmem>>, vector<1x1x128xf32>
    %111 = vector.shape_cast %110 : vector<1x1x128xf32> to vector<1x128xf32>
    %112 = vector.broadcast %111 : vector<1x128xf32> to vector<8x128xf32>
    %113 = arith.mulf %109, %112 : vector<8x128xf32>
    %c56_81 = arith.constant 56 : index
    %c0_82 = arith.constant 0 : index
    %114 = vector.load %arg8[%c56_81, %c0_82] : memref<72x128xf32, #tpu.memory_space<vmem>>, vector<8x128xf32>
    tpu.vector_store %arg8[%c56_81, %c0_82], %113 {strides = array<i32>} : memref<72x128xf32, #tpu.memory_space<vmem>>, vector<8x128xf32>,
    %c119_i32_83 = arith.constant 119 : i32
    %115 = tpu.dynamic_rotate %71 by %c119_i32_83 dim 1 : vector<8x128xf32>, i32 -> vector<8x128xf32>
    %c8_84 = arith.constant 8 : index
    %c0_85 = arith.constant 0 : index
    %c0_86 = arith.constant 0 : index
    %116 = vector.load %arg1[%c8_84, %c0_85, %c0_86] : memref<9x1x128xf32, #tpu.memory_space<vmem>>, vector<1x1x128xf32>
    %117 = vector.shape_cast %116 : vector<1x1x128xf32> to vector<1x128xf32>
    %118 = vector.broadcast %117 : vector<1x128xf32> to vector<8x128xf32>
    %119 = arith.mulf %115, %118 : vector<8x128xf32>
    %c64_87 = arith.constant 64 : index
    %c0_88 = arith.constant 0 : index
    %120 = vector.load %arg8[%c64_87, %c0_88] : memref<72x128xf32, #tpu.memory_space<vmem>>, vector<8x128xf32>
    tpu.vector_store %arg8[%c64_87, %c0_88], %119 {strides = array<i32>} : memref<72x128xf32, #tpu.memory_space<vmem>>, vector<8x128xf32>,
    %c0_89 = arith.constant 0 : index
    %c0_90 = arith.constant 0 : index
    %121 = vector.load %arg5[%c0_89, %c0_90] : memref<8x72xf32, #tpu.memory_space<vmem>>, vector<8x72xf32>
    %c0_91 = arith.constant 0 : index
    %c0_92 = arith.constant 0 : index
    %122 = vector.load %arg8[%c0_91, %c0_92] : memref<72x128xf32, #tpu.memory_space<vmem>>, vector<72x128xf32>
    %cst_93 = arith.constant dense<0.000000e+00> : vector<8x128xf32>
    %123 = tpu.matmul %121, %122, %cst_93 {dimension_numbers = #tpu.dot_dimension_numbers<[1], [0], [0], [1], [0, 0, 1, 1], [], []>} : vector<8x72xf32>, vector<72x128xf32>, vector<8x128xf32> -> vector<8x128xf32>
    %c0_94 = arith.constant 0 : index
    %c0_95 = arith.constant 0 : index
    %124 = vector.load %arg6[%c0_94, %c0_95] : memref<8x1xf32, #tpu.memory_space<vmem>>, vector<8x1xf32>
    %125 = vector.broadcast %124 : vector<8x1xf32> to vector<8x128xf32>
    %126 = arith.addf %123, %125 : vector<8x128xf32>
    %cst_96 = arith.constant 0.000000e+00 : f32
    %127 = vector.broadcast %cst_96 : f32 to vector<8x128xf32>
    %128 = arith.maximumf %126, %127 : vector<8x128xf32>
    %c0_97 = arith.constant 0 : index
    %c0_98 = arith.constant 0 : index
    %c0_99 = arith.constant 0 : index
    %129 = vector.load %arg7[%c0_97, %c0_98, %c0_99] : memref<1x8x128xf32, #tpu.memory_space<vmem>>, vector<1x8x128xf32>
    %130 = vector.shape_cast %129 : vector<1x8x128xf32> to vector<8x128xf32>
    %131 = vector.shape_cast %128 : vector<8x128xf32> to vector<1x8x128xf32>
    tpu.vector_store %arg7[%c0_97, %c0_98, %c0_99], %131 {strides = array<i32>} : memref<1x8x128xf32, #tpu.memory_space<vmem>>, vector<1x8x128xf32>,
    return
  }
  func.func @transform_0(%arg0: i32) -> (i32, i32, i32) {
    %c0_i32 = arith.constant 0 : i32
    %c0_i32_0 = arith.constant 0 : i32
    %c0_i32_1 = arith.constant 0 : i32
    %c0_i32_2 = arith.constant 0 : i32
    return %c0_i32, %c0_i32_0, %c0_i32_1 : i32, i32, i32
  }
  func.func @transform_1(%arg0: i32) -> (i32, i32, i32, i32) {
    %c0_i32 = arith.constant 0 : i32
    %c0_i32_0 = arith.constant 0 : i32
    %c0_i32_1 = arith.constant 0 : i32
    %c0_i32_2 = arith.constant 0 : i32
    return %arg0, %c0_i32, %c0_i32_0, %c0_i32_1 : i32, i32, i32, i32
  }
  func.func @transform_2(%arg0: i32) -> (i32, i32) {
    %c0_i32 = arith.constant 0 : i32
    %c0_i32_0 = arith.constant 0 : i32
    %c0_i32_1 = arith.constant 0 : i32
    return %c0_i32, %c0_i32_0 : i32, i32
  }
  func.func @transform_3(%arg0: i32) -> (i32, i32) {
    %c0_i32 = arith.constant 0 : i32
    %c0_i32_0 = arith.constant 0 : i32
    %c0_i32_1 = arith.constant 0 : i32
    return %c0_i32, %c0_i32_0 : i32, i32
  }
  func.func @transform_4(%arg0: i32) -> (i32, i32) {
    %c0_i32 = arith.constant 0 : i32
    %c0_i32_0 = arith.constant 0 : i32
    %c0_i32_1 = arith.constant 0 : i32
    return %c0_i32, %c0_i32_0 : i32, i32
  }
  func.func @transform_5(%arg0: i32) -> (i32, i32) {
    %c0_i32 = arith.constant 0 : i32
    %c0_i32_0 = arith.constant 0 : i32
    %c0_i32_1 = arith.constant 0 : i32
    return %c0_i32, %c0_i32_0 : i32, i32
  }
  func.func @transform_6(%arg0: i32) -> (i32, i32, i32) {
    %c0_i32 = arith.constant 0 : i32
    %c0_i32_0 = arith.constant 0 : i32
    %c0_i32_1 = arith.constant 0 : i32
    return %arg0, %c0_i32, %c0_i32_0 : i32, i32, i32
  }
}

</mosaic_0001>

<llo_original>
// kernel: conv_block_forward.1
$region0: #{conv_block_forward.1}
  #allocation0 [shape = 'u32[]', space=smem, size = 0x4, offset = 0x4, fixed_abs, tag = 'smem constant byte address 0x4 - core index']
  #allocation1 [shape = 'u32[144,128]{1,0:T(1,128)}', space=vmem, size = 0x12000, scoped, tag = 'internal scratch']
  #allocation2 [shape = 'f32[72,128]{1,0:T(8,128)}', space=vmem, size = 0x9000, scoped, tag = 'scratch operand']
  %s0 = inlined_call_operand.vmem [shape: f32[9,1,128], index: 0, kind: input, shape index: {}]
  %s1 = inlined_call_operand.vmem [shape: f32[1,4,4,128], index: 1, kind: input, shape index: {}]
  %s2 = inlined_call_operand.vmem [shape: f32[8,72], index: 2, kind: input, shape index: {}]
  %s3 = inlined_call_operand.vmem [shape: f32[8,1], index: 3, kind: input, shape index: {}]
  %s4 = inlined_call_operand.vmem [shape: f32[8,72], index: 4, kind: input, shape index: {}]
  %s5 = inlined_call_operand.vmem [shape: f32[8,1], index: 5, kind: input, shape index: {}]
  %s6 = inlined_call_operand.vmem [shape: f32[1,8,128], index: 6, kind: output, shape index: {}]
  %s7 = sld [smem:[#allocation0]]
  $region34: #{conv_block_forward.1} parent=0
    _
  %s9 = ssub.s32 1, %s7
  %s10 = scalar_select 0, %s9, %s7
  // Predicated region
  $region2: #{conv_block_forward.1} parent=0 // pred_check
    _
  $region3: #{conv_block_forward.1} parent=0 // pred_check_branch
    %12 = sbr.rel (0) target = $region5
  $region4: #{conv_block_forward.1} parent=0 // pred_region
    _
  $region5: #{conv_block_forward.1} parent=0 // pred_fallthru
    _
  // Predicated region
  $region6: #{conv_block_forward.1} parent=0 // pred_check
    _
  $region7: #{conv_block_forward.1} parent=0 // pred_check_branch
    %14 = sbr.rel (0) target = $region9
  $region8: #{conv_block_forward.1} parent=0 // pred_region
    _
  $region9: #{conv_block_forward.1} parent=0 // pred_fallthru
    _
  // Predicated region
  $region10: #{conv_block_forward.1} parent=0 // pred_check
    _
  $region11: #{conv_block_forward.1} parent=0 // pred_check_branch
    %16 = sbr.rel (0) target = $region13
  $region12: #{conv_block_forward.1} parent=0 // pred_region
    _
  $region13: #{conv_block_forward.1} parent=0 // pred_fallthru
    _
  // Predicated region
  $region14: #{conv_block_forward.1} parent=0 // pred_check
    _
  $region15: #{conv_block_forward.1} parent=0 // pred_check_branch
    %18 = sbr.rel (0) target = $region17
  $region16: #{conv_block_forward.1} parent=0 // pred_region
    _
  $region17: #{conv_block_forward.1} parent=0 // pred_fallthru
    _
  // Predicated region
  $region18: #{conv_block_forward.1} parent=0 // pred_check
    _
  $region19: #{conv_block_forward.1} parent=0 // pred_check_branch
    %20 = sbr.rel (0) target = $region21
  $region20: #{conv_block_forward.1} parent=0 // pred_region
    _
  $region21: #{conv_block_forward.1} parent=0 // pred_fallthru
    _
  // Predicated region
  $region22: #{conv_block_forward.1} parent=0 // pred_check
    _
  $region23: #{conv_block_forward.1} parent=0 // pred_check_branch
    %22 = sbr.rel (0) target = $region25
  $region24: #{conv_block_forward.1} parent=0 // pred_region
    _
  $region25: #{conv_block_forward.1} parent=0 // pred_fallthru
    _
  %v23 = vld [vmem:[%s1] sm:$0xf]
  %v24 = vld [vmem:[%s1 + $0x4] sm:$0xf]
  %v25 = vld [vmem:[%s1 + $0x8] sm:$0xf]
  %v26 = vld [vmem:[%s1 + $0xc] sm:$0xf]
  %v27 = vmax.f32 %v23, %v24
  %v28 = vmax.f32 %v25, %v26
  %v29 = vmax.f32 %v27, %v28
  %vm30 = vcmask 1043456
  %v31 = vsel %vm30, %v29, 0.0
  %32 = vrot.lane.b32.xlu0 %v31, 9
  %v33 = vpop.permute.xlu0 %32
  %v34 = vld [vmem:[%s0] sm:$0x1]
  %v36 = vlaneseq
  %v37 = vshrl.u32 %v36, 7
  %v38 = vsub.s32 0, %v37
  %v39 = vrot.slane %v34, %v38
  %v41 = vmul.f32 %v33, %v39
  %42 = vst [vmem:[#allocation2] sm:$0xff] %v41
  %43 = vrot.lane.b32.xlu0 %v31, 8
  %v44 = vpop.permute.xlu0 %43
  %s45 = scalar_lea.vmem %s0, 1
  %v46 = vld [vmem:[%s45] sm:$0x1]
  %v48 = vlaneseq
  %v49 = vshrl.u32 %v48, 7
  %v50 = vsub.s32 0, %v49
  %v51 = vrot.slane %v46, %v50
  %v53 = vmul.f32 %v44, %v51
  %54 = vst [vmem:[#allocation2 + $0x8] sm:$0xff] %v53
  %55 = vrot.lane.b32.xlu0 %v31, 7
  %v56 = vpop.permute.xlu0 %55
  %s57 = scalar_lea.vmem %s0, 2
  %v58 = vld [vmem:[%s57] sm:$0x1]
  %v60 = vlaneseq
  %v61 = vshrl.u32 %v60, 7
  %v62 = vsub.s32 0, %v61
  %v63 = vrot.slane %v58, %v62
  %v65 = vmul.f32 %v56, %v63
  %66 = vst [vmem:[#allocation2 + $0x10] sm:$0xff] %v65
  %67 = vrot.lane.b32.xlu0 %v31, 1
  %v68 = vpop.permute.xlu0 %67
  %s69 = scalar_lea.vmem %s0, 3
  %v70 = vld [vmem:[%s69] sm:$0x1]
  %v72 = vlaneseq
  %v73 = vshrl.u32 %v72, 7
  %v74 = vsub.s32 0, %v73
  %v75 = vrot.slane %v70, %v74
  %v77 = vmul.f32 %v68, %v75
  %78 = vst [vmem:[#allocation2 + $0x18] sm:$0xff] %v77
  %79 = vst [vmem:[#allocation2 + $0x20] sm:$0xff] %v31
  %80 = vrot.lane.b32.xlu0 %v31, 127
  %v81 = vpop.permute.xlu0 %80
  %s82 = scalar_lea.vmem %s0, 5
  %v83 = vld [vmem:[%s82] sm:$0x1]
  %v85 = vlaneseq
  %v86 = vshrl.u32 %v85, 7
  %v87 = vsub.s32 0, %v86
  %v88 = vrot.slane %v83, %v87
  %v90 = vmul.f32 %v81, %v88
  %91 = vst [vmem:[#allocation2 + $0x28] sm:$0xff] %v90
  %92 = vrot.lane.b32.xlu0 %v31, 121
  %v93 = vpop.permute.xlu0 %92
  %s94 = scalar_lea.vmem %s0, 6
  %v95 = vld [vmem:[%s94] sm:$0x1]
  %v97 = vlaneseq
  %v98 = vshrl.u32 %v97, 7
  %v99 = vsub.s32 0, %v98
  %v100 = vrot.slane %v95, %v99
  %v102 = vmul.f32 %v93, %v100
  %103 = vst [vmem:[#allocation2 + $0x30] sm:$0xff] %v102
  %104 = vrot.lane.b32.xlu0 %v31, 120
  %v105 = vpop.permute.xlu0 %104
  %s106 = scalar_lea.vmem %s0, 7
  %v107 = vld [vmem:[%s106] sm:$0x1]
  %v109 = vlaneseq
  %v110 = vshrl.u32 %v109, 7
  %v111 = vsub.s32 0, %v110
  %v112 = vrot.slane %v107, %v111
  %v114 = vmul.f32 %v105, %v112
  %115 = vst [vmem:[#allocation2 + $0x38] sm:$0xff] %v114
  %116 = vrot.lane.b32.xlu0 %v31, 119
  %v117 = vpop.permute.xlu0 %116
  %s118 = scalar_lea.vmem %s0, 8
  %v119 = vld [vmem:[%s118] sm:$0x1]
  %v121 = vlaneseq
  %v122 = vshrl.u32 %v121, 7
  %v123 = vsub.s32 0, %v122
  %v124 = vrot.slane %v119, %v123
  %v126 = vmul.f32 %v117, %v124
  %127 = vst [vmem:[#allocation2 + $0x40] sm:$0xff] %v126
  %v128 = vld [vmem:[%s2] sm:$0xff]
  %v129 = vld [vmem:[#allocation2] sm:$0xff]
  %v130 = vld [vmem:[#allocation2 + $0x8] sm:$0xff]
  %v131 = vld [vmem:[#allocation2 + $0x10] sm:$0xff]
  %v132 = vld [vmem:[#allocation2 + $0x18] sm:$0xff]
  %v133 = vld [vmem:[#allocation2 + $0x20] sm:$0xff]
  %v134 = vld [vmem:[#allocation2 + $0x28] sm:$0xff]
  %v135 = vld [vmem:[#allocation2 + $0x30] sm:$0xff]
  %v136 = vld [vmem:[#allocation2 + $0x38] sm:$0xff]
  %v137 = vld [vmem:[#allocation2 + $0x40] sm:$0xff]
  %v138 = vld [vmem:[%s3] sm:$0xff]
  %140 = vset.pattern.permute.xlu0 0
  %141 = vperm.xlu0 %140, %v138
  %v142 = vpop.permute.xlu0 %141
  %vm144 = vcmask 588800
  %v146 = vsel %vm144, %v128, 0
  %148 = vmatprep.subr.mxu0 0.0
  %149 = vmatpush1.msra.mxu0 %v129
  %150 = vmatprep.subr.mxu0 0.0
  %151 = vmatpush1.msra.mxu0 %v130
  %152 = vmatprep.subr.mxu0 0.0
  %153 = vmatpush1.msra.mxu0 %v131
  %154 = vmatprep.subr.mxu0 0.0
  %155 = vmatpush1.msra.mxu0 %v132
  %156 = vmatprep.subr.mxu0 0.0
  %157 = vmatpush1.msra.mxu0 %v133
  %158 = vmatprep.subr.mxu0 0.0
  %159 = vmatpush1.msra.mxu0 %v134
  %160 = vmatprep.subr.mxu0 0.0
  %161 = vmatpush1.msra.mxu0 %v135
  %162 = vmatprep.subr.mxu0 0.0
  %163 = vmatpush1.msra.mxu0 %v136
  %164 = vmatprep.subr.mxu0 0.0
  %165 = vmatpush1.msra.mxu0 %v137
  %166 = vmatprep.subr.mxu0 0.0
  %167 = vmatpush1.msra.mxu0 0.0
  %168 = vmatprep.subr.mxu0 0.0
  %169 = vmatpush1.msra.mxu0 0.0
  %170 = vmatprep.subr.mxu0 0.0
  %171 = vmatpush1.msra.mxu0 0.0
  %172 = vmatprep.subr.mxu0 0.0
  %173 = vmatpush1.msra.mxu0 0.0
  %174 = vmatprep.subr.mxu0 0.0
  %175 = vmatpush1.msra.mxu0 0.0
  %176 = vmatprep.subr.mxu0 0.0
  %177 = vmatpush1.msra.mxu0 0.0
  %178 = vmatprep.subr.mxu0 0.0
  %179 = vmatpush1.msra.mxu0 0.0
  %180 = vmatprep.subr.mxu0 0.0
  %181 = vmatpush1.msra.mxu0 0.0
  %182 = vmatprep.subr.mxu0 0.0
  %183 = vmatpush1.msra.mxu0 0.0
  %184 = vmatprep.subr.mxu0 0.0
  %185 = vmatpush1.msra.mxu0 0.0
  %186 = vmatprep.subr.mxu0 0.0
  %187 = vmatpush1.msra.mxu0 0.0
  %188 = vmatprep.subr.mxu0 0.0
  %189 = vmatpush1.msra.mxu0 0.0
  %190 = vmatprep.subr.mxu0 0.0
  %191 = vmatpush1.msra.mxu0 0.0
  %192 = vmatprep.subr.mxu0 0.0
  %193 = vmatpush1.msra.mxu0 0.0
  %194 = vmatprep.subr.mxu0 0.0
  %195 = vmatpush1.msra.mxu0 0.0
  %196 = vmatprep.subr.mxu0 0.0
  %197 = vmatpush1.msra.mxu0 0.0
  %198 = vmatprep.subr.mxu0 0.0
  %199 = vmatpush1.msra.mxu0 0.0
  %200 = vmatprep.subr.mxu0 0.0
  %201 = vmatpush1.msra.mxu0 0.0
  %202 = vmatprep.subr.mxu0 0.0
  %203 = vmatpush1.msra.mxu0 0.0
  %204 = vmatprep.subr.mxu0 0.0
  %205 = vmatpush1.msra.mxu0 0.0
  %206 = vmatprep.subr.mxu0 0.0
  %207 = vmatpush1.msra.mxu0 0.0
  %208 = vmatprep.subr.mxu0 0.0
  %209 = vmatpush1.msra.mxu0 0.0
  %210 = vmatprep.subr.mxu0 0.0
  %211 = vmatpush1.msra.mxu0 0.0
  %212 = vmatprep.mubr.f32.mxu0 0.0
  %213 = vmatmul.mubr.f32.gmra.mrb[0].mxu0 %v146
  %v214 = vpop.f32.mrb[0].mxu0
  %v215 = vadd.f32 %v142, %v214
  %v216 = vpop.f32.mrb[0].mxu0
  %217 = vdwg.mxu0
  %v218 = vmax.f32 %v215, 0.0
  %219 = vrot.lane.b32.xlu0 %v218, 9
  %v220 = vpop.permute.xlu0 %219
  %v221 = vld [vmem:[%s0] sm:$0x1]
  %v223 = vlaneseq
  %v224 = vshrl.u32 %v223, 7
  %v225 = vsub.s32 0, %v224
  %v226 = vrot.slane %v221, %v225
  %v228 = vmul.f32 %v220, %v226
  %229 = vst [vmem:[#allocation2] sm:$0xff] %v228
  %230 = vrot.lane.b32.xlu0 %v218, 8
  %v231 = vpop.permute.xlu0 %230
  %v232 = vld [vmem:[%s45] sm:$0x1]
  %v234 = vlaneseq
  %v235 = vshrl.u32 %v234, 7
  %v236 = vsub.s32 0, %v235
  %v237 = vrot.slane %v232, %v236
  %v239 = vmul.f32 %v231, %v237
  %240 = vst [vmem:[#allocation2 + $0x8] sm:$0xff] %v239
  %241 = vrot.lane.b32.xlu0 %v218, 7
  %v242 = vpop.permute.xlu0 %241
  %v243 = vld [vmem:[%s57] sm:$0x1]
  %v245 = vlaneseq
  %v246 = vshrl.u32 %v245, 7
  %v247 = vsub.s32 0, %v246
  %v248 = vrot.slane %v243, %v247
  %v250 = vmul.f32 %v242, %v248
  %251 = vst [vmem:[#allocation2 + $0x10] sm:$0xff] %v250
  %252 = vrot.lane.b32.xlu0 %v218, 1
  %v253 = vpop.permute.xlu0 %252
  %v254 = vld [vmem:[%s69] sm:$0x1]
  %v256 = vlaneseq
  %v257 = vshrl.u32 %v256, 7
  %v258 = vsub.s32 0, %v257
  %v259 = vrot.slane %v254, %v258
  %v261 = vmul.f32 %v253, %v259
  %262 = vst [vmem:[#allocation2 + $0x18] sm:$0xff] %v261
  %263 = vst [vmem:[#allocation2 + $0x20] sm:$0xff] %v218
  %264 = vrot.lane.b32.xlu0 %v218, 127
  %v265 = vpop.permute.xlu0 %264
  %v266 = vld [vmem:[%s82] sm:$0x1]
  %v268 = vlaneseq
  %v269 = vshrl.u32 %v268, 7
  %v270 = vsub.s32 0, %v269
  %v271 = vrot.slane %v266, %v270
  %v273 = vmul.f32 %v265, %v271
  %274 = vst [vmem:[#allocation2 + $0x28] sm:$0xff] %v273
  %275 = vrot.lane.b32.xlu0 %v218, 121
  %v276 = vpop.permute.xlu0 %275
  %v277 = vld [vmem:[%s94] sm:$0x1]
  %v279 = vlaneseq
  %v280 = vshrl.u32 %v279, 7
  %v281 = vsub.s32 0, %v280
  %v282 = vrot.slane %v277, %v281
  %v284 = vmul.f32 %v276, %v282
  %285 = vst [vmem:[#allocation2 + $0x30] sm:$0xff] %v284
  %286 = vrot.lane.b32.xlu0 %v218, 120
  %v287 = vpop.permute.xlu0 %286
  %v288 = vld [vmem:[%s106] sm:$0x1]
  %v290 = vlaneseq
  %v291 = vshrl.u32 %v290, 7
  %v292 = vsub.s32 0, %v291
  %v293 = vrot.slane %v288, %v292
  %v295 = vmul.f32 %v287, %v293
  %296 = vst [vmem:[#allocation2 + $0x38] sm:$0xff] %v295
  %297 = vrot.lane.b32.xlu0 %v218, 119
  %v298 = vpop.permute.xlu0 %297
  %v299 = vld [vmem:[%s118] sm:$0x1]
  %v301 = vlaneseq
  %v302 = vshrl.u32 %v301, 7
  %v303 = vsub.s32 0, %v302
  %v304 = vrot.slane %v299, %v303
  %v306 = vmul.f32 %v298, %v304
  %307 = vst [vmem:[#allocation2 + $0x40] sm:$0xff] %v306
  %v308 = vld [vmem:[%s4] sm:$0xff]
  %v309 = vld [vmem:[#allocation2] sm:$0xff]
  %v310 = vld [vmem:[#allocation2 + $0x8] sm:$0xff]
  %v311 = vld [vmem:[#allocation2 + $0x10] sm:$0xff]
  %v312 = vld [vmem:[#allocation2 + $0x18] sm:$0xff]
  %v313 = vld [vmem:[#allocation2 + $0x20] sm:$0xff]
  %v314 = vld [vmem:[#allocation2 + $0x28] sm:$0xff]
  %v315 = vld [vmem:[#allocation2 + $0x30] sm:$0xff]
  %v316 = vld [vmem:[#allocation2 + $0x38] sm:$0xff]
  %v317 = vld [vmem:[#allocation2 + $0x40] sm:$0xff]
  %v318 = vld [vmem:[%s5] sm:$0xff]
  %320 = vset.pattern.permute.xlu0 0
  %321 = vperm.xlu0 %320, %v318
  %v322 = vpop.permute.xlu0 %321
  %v325 = vsel %vm144, %v308, 0
  %327 = vmatprep.subr.mxu0 0.0
  %328 = vmatpush1.msra.mxu0 %v309
  %329 = vmatprep.subr.mxu0 0.0
  %330 = vmatpush1.msra.mxu0 %v310
  %331 = vmatprep.subr.mxu0 0.0
  %332 = vmatpush1.msra.mxu0 %v311
  %333 = vmatprep.subr.mxu0 0.0
  %334 = vmatpush1.msra.mxu0 %v312
  %335 = vmatprep.subr.mxu0 0.0
  %336 = vmatpush1.msra.mxu0 %v313
  %337 = vmatprep.subr.mxu0 0.0
  %338 = vmatpush1.msra.mxu0 %v314
  %339 = vmatprep.subr.mxu0 0.0
  %340 = vmatpush1.msra.mxu0 %v315
  %341 = vmatprep.subr.mxu0 0.0
  %342 = vmatpush1.msra.mxu0 %v316
  %343 = vmatprep.subr.mxu0 0.0
  %344 = vmatpush1.msra.mxu0 %v317
  %345 = vmatprep.subr.mxu0 0.0
  %346 = vmatpush1.msra.mxu0 0.0
  %347 = vmatprep.subr.mxu0 0.0
  %348 = vmatpush1.msra.mxu0 0.0
  %349 = vmatprep.subr.mxu0 0.0
  %350 = vmatpush1.msra.mxu0 0.0
  %351 = vmatprep.subr.mxu0 0.0
  %352 = vmatpush1.msra.mxu0 0.0
  %353 = vmatprep.subr.mxu0 0.0
  %354 = vmatpush1.msra.mxu0 0.0
  %355 = vmatprep.subr.mxu0 0.0
  %356 = vmatpush1.msra.mxu0 0.0
  %357 = vmatprep.subr.mxu0 0.0
  %358 = vmatpush1.msra.mxu0 0.0
  %359 = vmatprep.subr.mxu0 0.0
  %360 = vmatpush1.msra.mxu0 0.0
  %361 = vmatprep.subr.mxu0 0.0
  %362 = vmatpush1.msra.mxu0 0.0
  %363 = vmatprep.subr.mxu0 0.0
  %364 = vmatpush1.msra.mxu0 0.0
  %365 = vmatprep.subr.mxu0 0.0
  %366 = vmatpush1.msra.mxu0 0.0
  %367 = vmatprep.subr.mxu0 0.0
  %368 = vmatpush1.msra.mxu0 0.0
  %369 = vmatprep.subr.mxu0 0.0
  %370 = vmatpush1.msra.mxu0 0.0
  %371 = vmatprep.subr.mxu0 0.0
  %372 = vmatpush1.msra.mxu0 0.0
  %373 = vmatprep.subr.mxu0 0.0
  %374 = vmatpush1.msra.mxu0 0.0
  %375 = vmatprep.subr.mxu0 0.0
  %376 = vmatpush1.msra.mxu0 0.0
  %377 = vmatprep.subr.mxu0 0.0
  %378 = vmatpush1.msra.mxu0 0.0
  %379 = vmatprep.subr.mxu0 0.0
  %380 = vmatpush1.msra.mxu0 0.0
  %381 = vmatprep.subr.mxu0 0.0
  %382 = vmatpush1.msra.mxu0 0.0
  %383 = vmatprep.subr.mxu0 0.0
  %384 = vmatpush1.msra.mxu0 0.0
  %385 = vmatprep.subr.mxu0 0.0
  %386 = vmatpush1.msra.mxu0 0.0
  %387 = vmatprep.subr.mxu0 0.0
  %388 = vmatpush1.msra.mxu0 0.0
  %389 = vmatprep.subr.mxu0 0.0
  %390 = vmatpush1.msra.mxu0 0.0
  %391 = vmatprep.mubr.f32.mxu0 0.0
  %392 = vmatmul.mubr.f32.gmra.mrb[0].mxu0 %v325
  %v393 = vpop.f32.mrb[0].mxu0
  %v394 = vadd.f32 %v322, %v393
  %v395 = vpop.f32.mrb[0].mxu0
  %396 = vdwg.mxu0
  %v397 = vmax.f32 %v394, 0.0
  %398 = vst [vmem:[%s6] sm:$0xff] %v397
  // Predicated region
  $region26: #{conv_block_forward.1} parent=0 // pred_check
    _
  $region27: #{conv_block_forward.1} parent=0 // pred_check_branch
    %400 = sbr.rel (0) target = $region29
  $region28: #{conv_block_forward.1} parent=0 // pred_region
    _
  $region29: #{conv_block_forward.1} parent=0 // pred_fallthru
    _
  // Predicated region
  $region30: #{conv_block_forward.1} parent=0 // pred_check
    _
  $region31: #{conv_block_forward.1} parent=0 // pred_check_branch
    %402 = sbr.rel (0) target = $region33
  $region32: #{conv_block_forward.1} parent=0 // pred_region
    _
  $region33: #{conv_block_forward.1} parent=0 // pred_fallthru
    _

</llo_original>
